<compile_context>
chip_gen: v7x
topology: tpu7x:2x2x1
jax: 0.10.0
libtpu: 0.0.40
codegen_flags: <defaults>
</compile_context>

<pallas_src>
import functools
import math

import jax
import jax.numpy as jnp
from jax import lax
from jax.experimental import pallas as pl
from jax.experimental.pallas import tpu as pltpu


def _round_up(v: int, m: int) -> int:
    return ((v + m - 1) // m) * m


def _arc_margin_kernel(x_ref, inv_x_ref, wt_ref, inv_w_ref, o_ref, *, use_bf16):
    # x_ref:     (tm, K)  raw input rows
    # inv_x_ref: (tm, 1)  1 / max(||x_i||, eps)
    # wt_ref:    (K, tn)  weight pre-transposed to MXU-native (K, N) layout
    # inv_w_ref: (1, tn)  1 / max(||w_j||, eps)
    xn = x_ref[...].astype(jnp.float32) * inv_x_ref[...].astype(jnp.float32)
    wt = wt_ref[...]
    if use_bf16:
        xn = xn.astype(jnp.bfloat16)
        wt = wt.astype(jnp.bfloat16)
    else:
        wt = wt.astype(jnp.float32)
    # Pure MXU matmul, f32 accumulation; RHS already (K, N) -> no transpose.
    cos = jnp.dot(xn, wt, preferred_element_type=jnp.float32)
    # Column scale by 1/||w_j|| (VPU broadcast-mul on the output tile).
    o_ref[...] = (cos * inv_w_ref[...].astype(jnp.float32)).astype(o_ref.dtype)


def arc_margin_product(x, weight, *, tm=None, tn=None, use_bf16_matmul=False):
    """x: (B, in_dims), weight: (out_dims, in_dims) -> cosine (B, out_dims)."""
    B, K = x.shape
    N, Kw = weight.shape
    assert K == Kw

    eps = jnp.float32(1e-12)  # matches F.normalize default
    xf = x.astype(jnp.float32)
    wf = weight.astype(jnp.float32)

    # Hoisted normalization reductions (XLA-fused, done once):
    #   1 / max(||row||, eps) == rsqrt(max(sum(row^2), eps^2)); eps^2=1e-24 is
    #   a normal f32.  rsqrt -> EUP, avoids sqrt + full divide in the hot loop.
    inv_x = lax.rsqrt(jnp.maximum(jnp.sum(xf * xf, axis=-1, keepdims=True),
                                  eps * eps))            # (B, 1)
    inv_w = lax.rsqrt(jnp.maximum(jnp.sum(wf * wf, axis=-1, keepdims=True),
                                  eps * eps)).T           # (1, N)
    wt = wf.T                                             # (K, N) MXU-native

    # Tile sizes: tm multiple of 8 (f32 sublane), tn multiple of 128
    # (lane-dense output tile -> unmasked stores).  Keep the whole batch in a
    # single tile when it fits so the weight is streamed from HBM exactly once.
    if tm is None:
        tm = min(256, _round_up(B, 8))
    if tn is None:
        tn = min(512, _round_up(N, 128))
    tm = _round_up(tm, 8)
    tn = _round_up(tn, 128)

    B_pad = _round_up(B, tm)
    N_pad = _round_up(N, tn)

    x_p = jnp.pad(xf, ((0, B_pad - B), (0, 0)))
    inv_x_p = jnp.pad(inv_x, ((0, B_pad - B), (0, 0)))
    wt_p = jnp.pad(wt, ((0, 0), (0, N_pad - N)))
    inv_w_p = jnp.pad(inv_w, ((0, 0), (0, N_pad - N)))

    grid = (B_pad // tm, N_pad // tn)   # out_dims (j) is the inner streamed axis

    out = pl.pallas_call(
        functools.partial(_arc_margin_kernel, use_bf16=use_bf16_matmul),
        out_shape=jax.ShapeDtypeStruct((B_pad, N_pad), jnp.float32),
        grid=grid,
        in_specs=[
            pl.BlockSpec((tm, K), lambda i, j: (i, 0)),   # x rows (revisited over j)
            pl.BlockSpec((tm, 1), lambda i, j: (i, 0)),   # 1/||x_i||
            pl.BlockSpec((K, tn), lambda i, j: (0, j)),   # weight.T panel (streamed)
            pl.BlockSpec((1, tn), lambda i, j: (0, j)),   # 1/||w_j||
        ],
        out_specs=pl.BlockSpec((tm, tn), lambda i, j: (i, j)),
        compiler_params=pltpu.CompilerParams(
            # No cross-iteration state -> both axes are independent; lets v7x
            # shard the grid over its 2 TensorCores (no-op on v5e/v6e).
            dimension_semantics=("parallel", "parallel"),
        ),
    )(x_p, inv_x_p, wt_p, inv_w_p)

    return out[:B, :N]


def xavier_uniform(key, out_dims, in_dims):
    # nn.init.xavier_uniform_ on a (out_dims, in_dims) weight.
    limit = math.sqrt(6.0 / (in_dims + out_dims))
    return jax.random.uniform(
        key, (out_dims, in_dims), dtype=jnp.float32, minval=-limit, maxval=limit)


def arc_margin_reference(x, weight, eps=1e-12):
    xn = x / jnp.maximum(jnp.linalg.norm(x, axis=-1, keepdims=True), eps)
    wn = weight / jnp.maximum(jnp.linalg.norm(weight, axis=-1, keepdims=True), eps)
    return jnp.dot(xn, wn.T, precision=lax.Precision.HIGHEST)


if __name__ == "__main__":
    key = jax.random.PRNGKey(0)
    k1, k2, k3, k4 = jax.random.split(key, 4)

    # Small shapes consistent with the module: x (B, in_dims), weight (out, in).
    B, in_dims, out_dims = 8, 32, 16
    x = jax.random.normal(k1, (B, in_dims), dtype=jnp.float32)
    w = xavier_uniform(k2, out_dims, in_dims)

    out = jax.block_until_ready(arc_margin_product(x, w))
    ref = arc_margin_reference(x, w)
    assert out.shape == (B, out_dims)
    assert jnp.allclose(out, ref, atol=1e-4, rtol=1e-4), \
        float(jnp.max(jnp.abs(out - ref)))

    # Second case exercises the multi-tile grid + padding/slicing path.
    B2, in2, out2 = 24, 64, 300
    x2 = jax.random.normal(k3, (B2, in2), dtype=jnp.float32)
    w2 = xavier_uniform(k4, out2, in2)
    out2_v = jax.block_until_ready(arc_margin_product(x2, w2, tm=8, tn=128))
    ref2 = arc_margin_reference(x2, w2)
    assert out2_v.shape == (B2, out2)
    assert jnp.allclose(out2_v, ref2, atol=1e-4, rtol=1e-4), \
        float(jnp.max(jnp.abs(out2_v - ref2)))

    print("KERNEL_OK")
</pallas_src>

<mosaic_0001>
module attributes {stable_mosaic.version = 11 : i64} {
  func.func @_arc_margin_kernel(%arg0: i32, %arg1: i32, %arg2: memref<8x32xf32, #tpu.memory_space<vmem>>, %arg3: memref<8x1xf32, #tpu.memory_space<vmem>>, %arg4: memref<32x128xf32, #tpu.memory_space<vmem>>, %arg5: memref<1x128xf32, #tpu.memory_space<vmem>>, %arg6: memref<8x128xf32, #tpu.memory_space<vmem>>) attributes {dimension_semantics = [#tpu.dimension_semantics<parallel>, #tpu.dimension_semantics<parallel>], iteration_bounds = array<i64: 1, 1>, scalar_prefetch = 0 : i64, scratch_operands = 0 : i64, tpu.core_type = #tpu.core_type<tc>, window_params = [{transform_indices = @transform_0, window_bounds = array<i64: 8, 32>}, {transform_indices = @transform_1, window_bounds = array<i64: 8, 1>}, {transform_indices = @transform_2, window_bounds = array<i64: 32, 128>}, {transform_indices = @transform_3, window_bounds = array<i64: 1, 128>}, {transform_indices = @transform_4, window_bounds = array<i64: 8, 128>}]} {
    %c0 = arith.constant 0 : index
    %c0_0 = arith.constant 0 : index
    %0 = vector.load %arg2[%c0, %c0_0] : memref<8x32xf32, #tpu.memory_space<vmem>>, vector<8x32xf32>
    %c0_1 = arith.constant 0 : index
    %c0_2 = arith.constant 0 : index
    %1 = vector.load %arg3[%c0_1, %c0_2] : memref<8x1xf32, #tpu.memory_space<vmem>>, vector<8x1xf32>
    %2 = vector.broadcast %1 : vector<8x1xf32> to vector<8x32xf32>
    %3 = arith.mulf %0, %2 : vector<8x32xf32>
    %c0_3 = arith.constant 0 : index
    %c0_4 = arith.constant 0 : index
    %4 = vector.load %arg4[%c0_3, %c0_4] : memref<32x128xf32, #tpu.memory_space<vmem>>, vector<32x128xf32>
    %cst = arith.constant dense<0.000000e+00> : vector<8x128xf32>
    %5 = tpu.matmul %3, %4, %cst {dimension_numbers = #tpu.dot_dimension_numbers<[1], [0], [0], [1], [0, 0, 1, 1], [], []>} : vector<8x32xf32>, vector<32x128xf32>, vector<8x128xf32> -> vector<8x128xf32>
    %c0_5 = arith.constant 0 : index
    %c0_6 = arith.constant 0 : index
    %6 = vector.load %arg5[%c0_5, %c0_6] : memref<1x128xf32, #tpu.memory_space<vmem>>, vector<1x128xf32>
    %7 = vector.broadcast %6 : vector<1x128xf32> to vector<8x128xf32>
    %8 = arith.mulf %5, %7 : vector<8x128xf32>
    %c0_7 = arith.constant 0 : index
    %c0_8 = arith.constant 0 : index
    %9 = vector.load %arg6[%c0_7, %c0_8] : memref<8x128xf32, #tpu.memory_space<vmem>>, vector<8x128xf32>
    tpu.vector_store %arg6[%c0_7, %c0_8], %8 {strides = array<i32>} : memref<8x128xf32, #tpu.memory_space<vmem>>, vector<8x128xf32>,
    return
  }
  func.func @transform_0(%arg0: i32, %arg1: i32) -> (i32, i32) {
    %c0_i32 = arith.constant 0 : i32
    %c0_i32_0 = arith.constant 0 : i32
    return %arg0, %c0_i32 : i32, i32
  }
  func.func @transform_1(%arg0: i32, %arg1: i32) -> (i32, i32) {
    %c0_i32 = arith.constant 0 : i32
    %c0_i32_0 = arith.constant 0 : i32
    return %arg0, %c0_i32 : i32, i32
  }
  func.func @transform_2(%arg0: i32, %arg1: i32) -> (i32, i32) {
    %c0_i32 = arith.constant 0 : i32
    %c0_i32_0 = arith.constant 0 : i32
    return %c0_i32, %arg1 : i32, i32
  }
  func.func @transform_3(%arg0: i32, %arg1: i32) -> (i32, i32) {
    %c0_i32 = arith.constant 0 : i32
    %c0_i32_0 = arith.constant 0 : i32
    return %c0_i32, %arg1 : i32, i32
  }
  func.func @transform_4(%arg0: i32, %arg1: i32) -> (i32, i32) {
    %c0_i32 = arith.constant 0 : i32
    return %arg0, %arg1 : i32, i32
  }
}

</mosaic_0001>

<llo_original>
// kernel: tpu_custom_call.1
$region0: #{tpu_custom_call.1}
  #allocation0 [shape = 'u32[]', space=smem, size = 0x4, offset = 0x4, fixed_abs, tag = 'smem constant byte address 0x4 - core index']
  #allocation1 [shape = 'u32[144,128]{1,0:T(1,128)}', space=vmem, size = 0x12000, scoped, tag = 'internal scratch']
  %s0 = inlined_call_operand.vmem [shape: f32[8,32], index: 0, kind: input, shape index: {}]
  %s1 = inlined_call_operand.vmem [shape: f32[8,1], index: 1, kind: input, shape index: {}]
  %s2 = inlined_call_operand.hbm [shape: f32[32,128], index: 2, kind: input, shape index: {}]
  %s3 = inlined_call_operand.vmem [shape: f32[1,128], index: 3, kind: input, shape index: {}]
  %s4 = inlined_call_operand.hbm [shape: f32[8,128], index: 4, kind: output, shape index: {}]
  %s5 = sld [smem:[#allocation0]]
  $region30: #{tpu_custom_call.1} parent=0
    _
  %s7 = ssub.s32 1, %s5
  %s8 = scalar_select 0, %s7, %s5
  $region1: #{tpu_custom_call.1} parent=0
    #allocation2 [shape = 'u8[16384]{0}', space=vmem, size = 0x4000, scoped, tag = 'input window, operand 2, single buffered']
    #allocation3 [shape = 's32[1]{0}', space=sflag, size = 0x4, scoped, tag = 'scoped memory for tpu_custom_call.1']
    #allocation4 [shape = 's32[1]{0}', space=sflag, size = 0x4, scoped, tag = 'scoped memory for tpu_custom_call.1']
    #allocation5 [shape = 'u8[4096]{0}', space=vmem, size = 0x1000, scoped, tag = 'output window, operand 0, single buffered']
    %9 = vsyncpa [#allocation3], 0
    %10 = vsyncpa [#allocation4], 0
    // Predicated region
    $region2: #{tpu_custom_call.1} parent=1 // pred_check
      _
    $region3: #{tpu_custom_call.1} parent=1 // pred_check_branch
      %12 = sbr.rel (0) target = $region5
    $region4: #{tpu_custom_call.1} parent=1 // pred_region
      _
    $region5: #{tpu_custom_call.1} parent=1 // pred_fallthru
      _
    // Predicated region
    $region6: #{tpu_custom_call.1} parent=1 // pred_check
      _
    $region7: #{tpu_custom_call.1} parent=1 // pred_check_branch
      %14 = sbr.rel (0) target = $region9
    $region8: #{tpu_custom_call.1} parent=1 // pred_region
      _
    $region9: #{tpu_custom_call.1} parent=1 // pred_fallthru
      _
    // Predicated region
    $region10: #{tpu_custom_call.1} parent=1 // pred_check
      _
    $region11: #{tpu_custom_call.1} parent=1 // pred_check_branch
      %16 = sbr.rel (0) target = $region13
    $region12: #{tpu_custom_call.1} parent=1 // pred_region
      %s18 = ssub.s32 512, 512
      %19 = vsyncadd [#allocation3], %s18
      %s20 = sshll.u32 [#allocation2], 4
      %s21 = int_to_ptr.vmem [resolvable:$true] %s20
      %26 = dma.hbm_to_vmem [thread:$0]  %s2, 512, %s21, [#allocation3], 128, 128, 8
    $region13: #{tpu_custom_call.1} parent=1 // pred_fallthru
      _
    // Predicated region
    $region14: #{tpu_custom_call.1} parent=1 // pred_check
      _
    $region15: #{tpu_custom_call.1} parent=1 // pred_check_branch
      %28 = sbr.rel (0) target = $region17
    $region16: #{tpu_custom_call.1} parent=1 // pred_region
      _
    $region17: #{tpu_custom_call.1} parent=1 // pred_fallthru
      _
    // Predicated region
    $region18: #{tpu_custom_call.1} parent=1 // pred_check
      _
    $region19: #{tpu_custom_call.1} parent=1 // pred_check_branch
      %30 = sbr.rel (0) target = $region21
    $region20: #{tpu_custom_call.1} parent=1 // pred_region
      %31 = dma.done [#allocation3], 512
    $region21: #{tpu_custom_call.1} parent=1 // pred_fallthru
      _
    %v32 = vld [vmem:[%s0] sm:$0xff]
    %v33 = vld [vmem:[%s1] sm:$0xff]
    %35 = vset.pattern.permute.xlu0 0
    %36 = vperm.xlu0 %35, %v33
    %v37 = vpop.permute.xlu0 %36
    %v39 = vmul.f32 %v32, %v37
    %v40 = vld [vmem:[#allocation2] sm:$0xff]
    %v41 = vld [vmem:[#allocation2 + $0x8] sm:$0xff]
    %v42 = vld [vmem:[#allocation2 + $0x10] sm:$0xff]
    %v43 = vld [vmem:[#allocation2 + $0x18] sm:$0xff]
    %vm44 = vcmask 261120
    %v46 = vsel %vm44, %v39, 0
    %48 = vmatprep.subr.mxu0 0.0
    %49 = vmatpush1.msra.mxu0 %v40
    %50 = vmatprep.subr.mxu0 0.0
    %51 = vmatpush1.msra.mxu0 %v41
    %52 = vmatprep.subr.mxu0 0.0
    %53 = vmatpush1.msra.mxu0 %v42
    %54 = vmatprep.subr.mxu0 0.0
    %55 = vmatpush1.msra.mxu0 %v43
    %56 = vmatprep.subr.mxu0 0.0
    %57 = vmatpush1.msra.mxu0 0.0
    %58 = vmatprep.subr.mxu0 0.0
    %59 = vmatpush1.msra.mxu0 0.0
    %60 = vmatprep.subr.mxu0 0.0
    %61 = vmatpush1.msra.mxu0 0.0
    %62 = vmatprep.subr.mxu0 0.0
    %63 = vmatpush1.msra.mxu0 0.0
    %64 = vmatprep.subr.mxu0 0.0
    %65 = vmatpush1.msra.mxu0 0.0
    %66 = vmatprep.subr.mxu0 0.0
    %67 = vmatpush1.msra.mxu0 0.0
    %68 = vmatprep.subr.mxu0 0.0
    %69 = vmatpush1.msra.mxu0 0.0
    %70 = vmatprep.subr.mxu0 0.0
    %71 = vmatpush1.msra.mxu0 0.0
    %72 = vmatprep.subr.mxu0 0.0
    %73 = vmatpush1.msra.mxu0 0.0
    %74 = vmatprep.subr.mxu0 0.0
    %75 = vmatpush1.msra.mxu0 0.0
    %76 = vmatprep.subr.mxu0 0.0
    %77 = vmatpush1.msra.mxu0 0.0
    %78 = vmatprep.subr.mxu0 0.0
    %79 = vmatpush1.msra.mxu0 0.0
    %80 = vmatprep.subr.mxu0 0.0
    %81 = vmatpush1.msra.mxu0 0.0
    %82 = vmatprep.subr.mxu0 0.0
    %83 = vmatpush1.msra.mxu0 0.0
    %84 = vmatprep.subr.mxu0 0.0
    %85 = vmatpush1.msra.mxu0 0.0
    %86 = vmatprep.subr.mxu0 0.0
    %87 = vmatpush1.msra.mxu0 0.0
    %88 = vmatprep.subr.mxu0 0.0
    %89 = vmatpush1.msra.mxu0 0.0
    %90 = vmatprep.subr.mxu0 0.0
    %91 = vmatpush1.msra.mxu0 0.0
    %92 = vmatprep.subr.mxu0 0.0
    %93 = vmatpush1.msra.mxu0 0.0
    %94 = vmatprep.subr.mxu0 0.0
    %95 = vmatpush1.msra.mxu0 0.0
    %96 = vmatprep.subr.mxu0 0.0
    %97 = vmatpush1.msra.mxu0 0.0
    %98 = vmatprep.subr.mxu0 0.0
    %99 = vmatpush1.msra.mxu0 0.0
    %100 = vmatprep.subr.mxu0 0.0
    %101 = vmatpush1.msra.mxu0 0.0
    %102 = vmatprep.subr.mxu0 0.0
    %103 = vmatpush1.msra.mxu0 0.0
    %104 = vmatprep.subr.mxu0 0.0
    %105 = vmatpush1.msra.mxu0 0.0
    %106 = vmatprep.subr.mxu0 0.0
    %107 = vmatpush1.msra.mxu0 0.0
    %108 = vmatprep.subr.mxu0 0.0
    %109 = vmatpush1.msra.mxu0 0.0
    %110 = vmatprep.subr.mxu0 0.0
    %111 = vmatpush1.msra.mxu0 0.0
    %112 = vmatprep.mubr.f32.mxu0 0.0
    %113 = vmatmul.mubr.f32.gmra.mrb[0].mxu0 %v46
    %v114 = vpop.f32.mrb[0].mxu0
    %v115 = vadd.f32 0.0, %v114
    %v116 = vpop.f32.mrb[0].mxu0
    %117 = vdwg.mxu0
    %v118 = vld [vmem:[%s3] sm:$0x1]
    %v120 = vlaneseq
    %v121 = vshrl.u32 %v120, 7
    %v122 = vsub.s32 0, %v121
    %v123 = vrot.slane %v118, %v122
    %v125 = vmul.f32 %v115, %v123
    %126 = vst [vmem:[#allocation5] sm:$0xff] %v125
    // Predicated region
    $region22: #{tpu_custom_call.1} parent=1 // pred_check
      _
    $region23: #{tpu_custom_call.1} parent=1 // pred_check_branch
      %128 = sbr.rel (0) target = $region25
    $region24: #{tpu_custom_call.1} parent=1 // pred_region
      %s130 = ssub.s32 128, 128
      %131 = vsyncadd [#allocation4], %s130
      %s133 = sshll.u32 [#allocation5], 4
      %s134 = int_to_ptr.vmem [resolvable:$true] %s133
      %136 = dma.vmem_to_hbm [thread:$0]  %s134, 128, %s4, [#allocation4]
    $region25: #{tpu_custom_call.1} parent=1 // pred_fallthru
      _
    // Predicated region
    $region26: #{tpu_custom_call.1} parent=1 // pred_check
      _
    $region27: #{tpu_custom_call.1} parent=1 // pred_check_branch
      %138 = sbr.rel (0) target = $region29
    $region28: #{tpu_custom_call.1} parent=1 // pred_region
      %139 = dma.done [#allocation4], 128
    $region29: #{tpu_custom_call.1} parent=1 // pred_fallthru
      _
    %140 = vsyncpa [#allocation3], 1
    %141 = vsyncpa [#allocation4], 1

</llo_original>
